<compile_context>
chip_gen: v5e
topology: v5e:2x2
jax: 0.10.0
libtpu: 0.0.40
codegen_flags: <defaults>
</compile_context>

<pallas_src>
import functools

import jax
import jax.numpy as jnp
import numpy as np
from jax import lax
from jax.experimental import pallas as pl
from jax.experimental.pallas import tpu as pltpu

F32 = jnp.float32
LANES = 128
SUBLANES = 8


def _round_up(x, m):
    return -(-x // m) * m


# ----------------------------------------------------------------------------
# Kernels
# ----------------------------------------------------------------------------
def _step_kernel(x_ref, h_ref, w1_ref, b1_ref, wg_ref, bg_ref, w2_ref, b2_ref,
                 q_ref, hnew_ref, *, H):
    """Single forward() step (no recurrence loop)."""
    x = x_ref[...]
    h = h_ref[...]
    xh = jnp.maximum(
        jnp.dot(x, w1_ref[...], preferred_element_type=F32) + b1_ref[...], 0.0)
    g = jnp.dot(jnp.concatenate([xh, h], axis=1), wg_ref[...],
                preferred_element_type=F32) + bg_ref[...]
    r = jax.nn.sigmoid(g[:, 0:H])
    z = jax.nn.sigmoid(g[:, H:2 * H])
    n = jnp.tanh(g[:, 2 * H:3 * H] + r * g[:, 3 * H:4 * H])
    h_new = (1.0 - z) * n + z * h
    q = jnp.dot(h_new, w2_ref[...], preferred_element_type=F32) + b2_ref[...]
    q_ref[...] = q.astype(q_ref.dtype)
    hnew_ref[...] = h_new.astype(hnew_ref.dtype)


def _rollout_kernel(x_ref, h0_ref, w1_ref, b1_ref, wg_ref, bg_ref, w2_ref,
                    b2_ref, q_ref, hlast_ref, carry_scr, *, H, Tc, T_true):
    """One time-chunk of the rollout for one batch block.

    carry_scr is a (bb, 2H) VMEM buffer laid out as the fused matmul K:
    columns [0:H] hold relu(fc1(x_t)), columns [H:2H] hold the hidden carry.
    """
    c = pl.program_id(1)  # time-chunk index (innermost, sequential)

    @pl.when(c == 0)
    def _init():  # (re)initialize hidden carry at the start of each batch block
        carry_scr[:, H:2 * H] = h0_ref[...]

    # Weights stay VMEM-resident across the whole grid (constant index maps);
    # load them once per chunk and reuse across the unrolled steps.
    w1 = w1_ref[...]
    b1 = b1_ref[...]
    wg = wg_ref[...]
    bg = bg_ref[...]
    w2 = w2_ref[...]
    b2 = b2_ref[...]

    def step(i, carry):
        xh = jnp.maximum(
            jnp.dot(x_ref[i], w1, preferred_element_type=F32) + b1, 0.0)
        carry_scr[:, 0:H] = xh            # write straight into fused-K layout
        xh_h = carry_scr[...]
        h = xh_h[:, H:2 * H]
        g = jnp.dot(xh_h, wg, preferred_element_type=F32) + bg
        r = jax.nn.sigmoid(g[:, 0:H])
        z = jax.nn.sigmoid(g[:, H:2 * H])
        n = jnp.tanh(g[:, 2 * H:3 * H] + r * g[:, 3 * H:4 * H])
        h_new = (1.0 - z) * n + z * h
        # Freeze the carry on time-padded steps (T padded up to multiple of Tc).
        h_new = jnp.where(c * Tc + i < T_true, h_new, h)
        carry_scr[:, H:2 * H] = h_new
        q_ref[i] = (jnp.dot(h_new, w2, preferred_element_type=F32)
                    + b2).astype(q_ref.dtype)
        return carry

    lax.fori_loop(0, Tc, step, 0, unroll=True)

    @pl.when(c == pl.num_programs(1) - 1)
    def _finalize():
        hlast_ref[...] = carry_scr[:, H:2 * H].astype(hlast_ref.dtype)


# ----------------------------------------------------------------------------
# Wrappers
# ----------------------------------------------------------------------------
def q_network_rnn_step(x, h, packed):
    """Single forward() step. x: (B, in_dim), h: (B, H) -> (Q: (B, A), h_new)."""
    B = x.shape[0]
    Bp = _round_up(B, SUBLANES)
    if Bp != B:
        x = jnp.pad(x, ((0, Bp - B), (0, 0)))
        h = jnp.pad(h, ((0, Bp - B), (0, 0)))
    H = packed["hidden"]
    A = packed["action_dim"]
    Apad = packed["w2"].shape[1]

    vmem = pl.BlockSpec(memory_space=pltpu.MemorySpace.VMEM)
    q, h_new = pl.pallas_call(
        functools.partial(_step_kernel, H=H),
        out_shape=(jax.ShapeDtypeStruct((Bp, Apad), F32),
                   jax.ShapeDtypeStruct((Bp, H), F32)),
        in_specs=[vmem] * 8,
        out_specs=(vmem, vmem),
        input_output_aliases={1: 1},  # update the hidden state in place
    )(x, h, packed["w1"], packed["b1"], packed["w_gru"], packed["b_gru"],
      packed["w2"], packed["b2"])
    return q[:B, :A], h_new[:B]


def q_network_rnn_rollout(xs, h0, packed, *, time_chunk=8, batch_block=None):
    """T repeated forward() calls carrying rnn_hidden, time loop in-kernel.

    xs: (T, B, in_dim), h0: (B, H) -> (Qs: (T, B, A), h_last: (B, H)).
    time_chunk amortizes per-grid-step overhead; batch_block (multiple of 8)
    adds a "parallel" batch-block grid axis (2x on v7x's two TensorCores).
    """
    T, B, D = xs.shape
    H = packed["hidden"]
    A = packed["action_dim"]
    Apad = packed["w2"].shape[1]

    Bp = _round_up(B, SUBLANES)
    bb = Bp if batch_block is None else batch_block
    assert bb % SUBLANES == 0 and Bp % bb == 0, \
        "batch_block must be a multiple of 8 that divides the padded batch"

    Tc = max(1, min(time_chunk, T))
    num_chunks = pl.cdiv(T, Tc)
    Tpad = num_chunks * Tc

    # No-op when B is already a multiple of 8 and T a multiple of the chunk;
    # keep batches aligned upstream to avoid this HBM copy on every call.
    if Bp != B:
        xs = jnp.pad(xs, ((0, 0), (0, Bp - B), (0, 0)))
        h0 = jnp.pad(h0, ((0, Bp - B), (0, 0)))
    if Tpad != T:
        xs = jnp.pad(xs, ((0, Tpad - T), (0, 0), (0, 0)))

    w1, b1 = packed["w1"], packed["b1"]
    wg, bg = packed["w_gru"], packed["b_gru"]
    w2, b2 = packed["w2"], packed["b2"]

    const = lambda b, c: (0, 0)  # weights stay VMEM-resident across the grid

    grid_spec = pltpu.PrefetchScalarGridSpec(
        num_scalar_prefetch=0,
        grid=(Bp // bb, num_chunks),  # (batch blocks, time chunks)
        in_specs=[
            pl.BlockSpec((Tc, bb, D), lambda b, c: (c, b, 0)),   # xs chunk
            pl.BlockSpec((bb, H), lambda b, c: (b, 0)),          # h0 block
            pl.BlockSpec(w1.shape, const),
            pl.BlockSpec(b1.shape, const),
            pl.BlockSpec(wg.shape, const),
            pl.BlockSpec(bg.shape, const),
            pl.BlockSpec(w2.shape, const),
            pl.BlockSpec(b2.shape, const),
        ],
        out_specs=(
            pl.BlockSpec((Tc, bb, Apad), lambda b, c: (c, b, 0)),  # Q chunk
            pl.BlockSpec((bb, H), lambda b, c: (b, 0)),            # final hidden
        ),
        scratch_shapes=[pltpu.VMEM((bb, 2 * H), F32)],             # [xh | h] carry
    )

    qs, h_last = pl.pallas_call(
        functools.partial(_rollout_kernel, H=H, Tc=Tc, T_true=T),
        out_shape=(jax.ShapeDtypeStruct((Tpad, Bp, Apad), F32),
                   jax.ShapeDtypeStruct((Bp, H), F32)),
        grid_spec=grid_spec,
        compiler_params=pltpu.CompilerParams(
            dimension_semantics=("parallel", "arbitrary")),
    )(xs, h0, w1, b1, wg, bg, w2, b2)
    return qs[:T, :B, :A], h_last[:B]


# ----------------------------------------------------------------------------
# Parameters (PyTorch layout) + packing for the fused kernel
# ----------------------------------------------------------------------------
def make_params(key, input_dim, hidden, action_dim, random_bias=False):
    """Orthogonal init (gain=1.0) like orthogonal_init; biases zero by default.
    random_bias=True is only used to exercise the bias-packing math in tests."""
    ortho = jax.nn.initializers.orthogonal(scale=1.0)
    keys = jax.random.split(key, 8)

    w1 = ortho(keys[0], (hidden, input_dim), F32).T        # (in, H) for x @ W
    w_ih = ortho(keys[1], (3 * hidden, hidden), F32)       # (3H, H), gates r,z,n
    w_hh = ortho(keys[2], (3 * hidden, hidden), F32)
    w2 = ortho(keys[3], (action_dim, hidden), F32).T       # (H, A)

    def bias(k, n):
        if random_bias:
            return 0.1 * jax.random.normal(k, (n,), F32)
        return jnp.zeros((n,), F32)

    return {
        "w1": w1, "b1": bias(keys[4], hidden),
        "w_ih": w_ih, "b_ih": bias(keys[5], 3 * hidden),
        "w_hh": w_hh, "b_hh": bias(keys[6], 3 * hidden),
        "w2": w2, "b2": bias(keys[7], action_dim),
    }


def pack_params(p):
    """Pack raw per-gate params into the fused kernel arrays.

    GRU: fused (2H, 4H) weight with columns [pre_r | pre_z | gi_n | gh_n]
    (r/z biases pre-summed, b_in / b_hn kept separate -> exact PyTorch GRUCell).
    fc2: zero-padded to a multiple of 128 output columns (lane-dense Q stores).
    """
    H = p["w_hh"].shape[1]
    A = p["w2"].shape[1]
    Apad = _round_up(A, LANES)

    wih, whh = p["w_ih"], p["w_hh"]
    bih, bhh = p["b_ih"], p["b_hh"]
    Wir, Wiz, Win = wih[:H].T, wih[H:2 * H].T, wih[2 * H:].T
    Whr, Whz, Whn = whh[:H].T, whh[H:2 * H].T, whh[2 * H:].T
    zeros = jnp.zeros((H, H), F32)
    top = jnp.concatenate([Wir, Wiz, Win, zeros], axis=1)   # multiplied by xh
    bot = jnp.concatenate([Whr, Whz, zeros, Whn], axis=1)   # multiplied by h
    w_gru = jnp.concatenate([top, bot], axis=0)             # (2H, 4H)
    b_gru = jnp.concatenate([bih[:H] + bhh[:H],
                             bih[H:2 * H] + bhh[H:2 * H],
                             bih[2 * H:], bhh[2 * H:]]).reshape(1, -1)

    w2p = jnp.pad(p["w2"], ((0, 0), (0, Apad - A)))
    b2p = jnp.pad(p["b2"], (0, Apad - A)).reshape(1, -1)

    return {
        "w1": p["w1"], "b1": p["b1"].reshape(1, -1),
        "w_gru": w_gru, "b_gru": b_gru,
        "w2": w2p, "b2": b2p,
        "hidden": H, "action_dim": A,
    }


# ----------------------------------------------------------------------------
# Pure-JAX reference (PyTorch GRUCell semantics, raw per-gate weights)
# ----------------------------------------------------------------------------
def reference_step(x, h, p):
    xh = jnp.maximum(x @ p["w1"] + p["b1"], 0.0)
    H = h.shape[1]
    gi = xh @ p["w_ih"].T + p["b_ih"]
    gh = h @ p["w_hh"].T + p["b_hh"]
    r = jax.nn.sigmoid(gi[:, :H] + gh[:, :H])
    z = jax.nn.sigmoid(gi[:, H:2 * H] + gh[:, H:2 * H])
    n = jnp.tanh(gi[:, 2 * H:] + r * gh[:, 2 * H:])
    h_new = (1.0 - z) * n + z * h
    q = h_new @ p["w2"] + p["b2"]
    return q, h_new


if __name__ == "__main__":
    input_dim, hidden, action_dim = 16, 32, 8

    # (B, T, time_chunk, batch_block, random_bias)
    cases = [
        (8, 8, 4, None, False),   # aligned batch, T multiple of chunk (fast path)
        (4, 6, 4, None, True),    # exercises batch-pad and time-pad/freeze paths
        (16, 8, 8, 8, True),      # two batch blocks (v7x-style parallel axis)
    ]

    rng = jax.random.PRNGKey(0)
    ok = True
    for (B, T, Tc, bb, random_bias) in cases:
        rng, k_x, k_p = jax.random.split(rng, 3)
        raw = make_params(k_p, input_dim, hidden, action_dim,
                          random_bias=random_bias)
        packed = pack_params(raw)

        xs = jax.random.normal(k_x, (T, B, input_dim), dtype=F32)
        h0 = jnp.zeros((B, hidden), F32)   # rnn_hidden = None -> zeros

        # Single forward() step.
        q, h1 = q_network_rnn_step(xs[0], h0, packed)
        jax.block_until_ready((q, h1))
        q_r, h1_r = reference_step(xs[0], h0, raw)
        ok &= np.allclose(np.asarray(q), np.asarray(q_r), atol=1e-4, rtol=1e-5)
        ok &= np.allclose(np.asarray(h1), np.asarray(h1_r), atol=1e-4, rtol=1e-5)

        # T repeated forward() calls (rollout, chunked time loop inside kernel).
        qs, h_last = q_network_rnn_rollout(xs, h0, packed,
                                           time_chunk=Tc, batch_block=bb)
        jax.block_until_ready((qs, h_last))
        h_r = h0
        qs_r = []
        for t in range(T):
            q_t, h_r = reference_step(xs[t], h_r, raw)
            qs_r.append(q_t)
        qs_r = jnp.stack(qs_r)
        ok &= np.allclose(np.asarray(qs), np.asarray(qs_r), atol=1e-4, rtol=1e-5)
        ok &= np.allclose(np.asarray(h_last), np.asarray(h_r), atol=1e-4, rtol=1e-5)

    assert ok
    print("KERNEL_OK")
</pallas_src>

<mosaic_0001>
module attributes {stable_mosaic.version = 11 : i64} {
  func.func @_step_kernel(%arg0: memref<8x16xf32, #tpu.memory_space<vmem>>, %arg1: memref<8x32xf32, #tpu.memory_space<vmem>>, %arg2: memref<16x32xf32, #tpu.memory_space<vmem>>, %arg3: memref<1x32xf32, #tpu.memory_space<vmem>>, %arg4: memref<64x128xf32, #tpu.memory_space<vmem>>, %arg5: memref<1x128xf32, #tpu.memory_space<vmem>>, %arg6: memref<32x128xf32, #tpu.memory_space<vmem>>, %arg7: memref<1x128xf32, #tpu.memory_space<vmem>>, %arg8: memref<8x128xf32, #tpu.memory_space<vmem>>, %arg9: memref<8x32xf32, #tpu.memory_space<vmem>>) attributes {dimension_semantics = [], scalar_prefetch = 0 : i64, scratch_operands = 0 : i64, tpu.core_type = #tpu.core_type<tc>} {
    %c0 = arith.constant 0 : index
    %c0_0 = arith.constant 0 : index
    %0 = vector.load %arg0[%c0, %c0_0] : memref<8x16xf32, #tpu.memory_space<vmem>>, vector<8x16xf32>
    %c0_1 = arith.constant 0 : index
    %c0_2 = arith.constant 0 : index
    %1 = vector.load %arg1[%c0_1, %c0_2] : memref<8x32xf32, #tpu.memory_space<vmem>>, vector<8x32xf32>
    %c0_3 = arith.constant 0 : index
    %c0_4 = arith.constant 0 : index
    %2 = vector.load %arg2[%c0_3, %c0_4] : memref<16x32xf32, #tpu.memory_space<vmem>>, vector<16x32xf32>
    %cst = arith.constant dense<0.000000e+00> : vector<8x32xf32>
    %3 = tpu.matmul %0, %2, %cst {dimension_numbers = #tpu.dot_dimension_numbers<[1], [0], [0], [1], [0, 0, 1, 1], [], []>} : vector<8x16xf32>, vector<16x32xf32>, vector<8x32xf32> -> vector<8x32xf32>
    %c0_5 = arith.constant 0 : index
    %c0_6 = arith.constant 0 : index
    %4 = vector.load %arg3[%c0_5, %c0_6] : memref<1x32xf32, #tpu.memory_space<vmem>>, vector<1x32xf32>
    %5 = vector.broadcast %4 : vector<1x32xf32> to vector<8x32xf32>
    %6 = arith.addf %3, %5 : vector<8x32xf32>
    %cst_7 = arith.constant 0.000000e+00 : f32
    %7 = vector.broadcast %cst_7 : f32 to vector<8x32xf32>
    %8 = arith.maximumf %6, %7 : vector<8x32xf32>
    %9 = tpu.concatenate %8, %1 in 1 : vector<8x32xf32>, vector<8x32xf32> -> vector<8x64xf32>
    %c0_8 = arith.constant 0 : index
    %c0_9 = arith.constant 0 : index
    %10 = vector.load %arg4[%c0_8, %c0_9] : memref<64x128xf32, #tpu.memory_space<vmem>>, vector<64x128xf32>
    %cst_10 = arith.constant dense<0.000000e+00> : vector<8x128xf32>
    %11 = tpu.matmul %9, %10, %cst_10 {dimension_numbers = #tpu.dot_dimension_numbers<[1], [0], [0], [1], [0, 0, 1, 1], [], []>} : vector<8x64xf32>, vector<64x128xf32>, vector<8x128xf32> -> vector<8x128xf32>
    %c0_11 = arith.constant 0 : index
    %c0_12 = arith.constant 0 : index
    %12 = vector.load %arg5[%c0_11, %c0_12] : memref<1x128xf32, #tpu.memory_space<vmem>>, vector<1x128xf32>
    %13 = vector.broadcast %12 : vector<1x128xf32> to vector<8x128xf32>
    %14 = arith.addf %11, %13 : vector<8x128xf32>
    %15 = vector.extract_strided_slice %14 {offsets = [0, 0], sizes = [8, 32], strides = [1, 1]} : vector<8x128xf32> to vector<8x32xf32>
    %16 = arith.negf %15 : vector<8x32xf32>
    %17 = math.exp %16 : vector<8x32xf32>
    %cst_13 = arith.constant 1.000000e+00 : f32
    %18 = vector.broadcast %cst_13 : f32 to vector<8x32xf32>
    %19 = arith.addf %18, %17 : vector<8x32xf32>
    %20 = arith.divf %18, %19 : vector<8x32xf32>
    %21 = vector.extract_strided_slice %14 {offsets = [0, 32], sizes = [8, 32], strides = [1, 1]} : vector<8x128xf32> to vector<8x32xf32>
    %22 = arith.negf %21 : vector<8x32xf32>
    %23 = math.exp %22 : vector<8x32xf32>
    %cst_14 = arith.constant 1.000000e+00 : f32
    %24 = vector.broadcast %cst_14 : f32 to vector<8x32xf32>
    %25 = arith.addf %24, %23 : vector<8x32xf32>
    %26 = arith.divf %24, %25 : vector<8x32xf32>
    %27 = vector.extract_strided_slice %14 {offsets = [0, 64], sizes = [8, 32], strides = [1, 1]} : vector<8x128xf32> to vector<8x32xf32>
    %28 = vector.extract_strided_slice %14 {offsets = [0, 96], sizes = [8, 32], strides = [1, 1]} : vector<8x128xf32> to vector<8x32xf32>
    %29 = arith.mulf %20, %28 : vector<8x32xf32>
    %30 = arith.addf %27, %29 : vector<8x32xf32>
    %31 = math.tanh %30 : vector<8x32xf32>
    %cst_15 = arith.constant 1.000000e+00 : f32
    %32 = vector.broadcast %cst_15 : f32 to vector<8x32xf32>
    %33 = arith.subf %32, %26 : vector<8x32xf32>
    %34 = arith.mulf %33, %31 : vector<8x32xf32>
    %35 = arith.mulf %26, %1 : vector<8x32xf32>
    %36 = arith.addf %34, %35 : vector<8x32xf32>
    %c0_16 = arith.constant 0 : index
    %c0_17 = arith.constant 0 : index
    %37 = vector.load %arg6[%c0_16, %c0_17] : memref<32x128xf32, #tpu.memory_space<vmem>>, vector<32x128xf32>
    %cst_18 = arith.constant dense<0.000000e+00> : vector<8x128xf32>
    %38 = tpu.matmul %36, %37, %cst_18 {dimension_numbers = #tpu.dot_dimension_numbers<[1], [0], [0], [1], [0, 0, 1, 1], [], []>} : vector<8x32xf32>, vector<32x128xf32>, vector<8x128xf32> -> vector<8x128xf32>
    %c0_19 = arith.constant 0 : index
    %c0_20 = arith.constant 0 : index
    %39 = vector.load %arg7[%c0_19, %c0_20] : memref<1x128xf32, #tpu.memory_space<vmem>>, vector<1x128xf32>
    %40 = vector.broadcast %39 : vector<1x128xf32> to vector<8x128xf32>
    %41 = arith.addf %38, %40 : vector<8x128xf32>
    %c0_21 = arith.constant 0 : index
    %c0_22 = arith.constant 0 : index
    %42 = vector.load %arg8[%c0_21, %c0_22] : memref<8x128xf32, #tpu.memory_space<vmem>>, vector<8x128xf32>
    tpu.vector_store %arg8[%c0_21, %c0_22], %41 {strides = array<i32>} : memref<8x128xf32, #tpu.memory_space<vmem>>, vector<8x128xf32>,
    %c0_23 = arith.constant 0 : index
    %c0_24 = arith.constant 0 : index
    %43 = vector.load %arg9[%c0_23, %c0_24] : memref<8x32xf32, #tpu.memory_space<vmem>>, vector<8x32xf32>
    tpu.vector_store %arg9[%c0_23, %c0_24], %36 {strides = array<i32>} : memref<8x32xf32, #tpu.memory_space<vmem>>, vector<8x32xf32>,
    return
  }
}

</mosaic_0001>

<llo_original>
// kernel: tpu_custom_call.1
$region0: #{tpu_custom_call.1}
  #allocation0 [shape = 'u32[]', space=smem, size = 0x4, offset = 0x4, fixed_abs, tag = 'smem constant byte address 0x4 - core index']
  #allocation1 [shape = 'u32[72,128]{1,0:T(1,128)}', space=vmem, size = 0x9000, scoped, tag = 'internal scratch']
  %s0 = inlined_call_operand.hbm [shape: f32[8,16], index: 0, kind: input, shape index: {}]
  %s1 = inlined_call_operand.hbm [shape: f32[8,32], index: 1, kind: input, shape index: {}, may-alias: {1,9}]
  %s2 = inlined_call_operand.vmem [shape: f32[16,32], index: 2, kind: input, shape index: {}]
  %s3 = inlined_call_operand.vmem [shape: f32[1,32], index: 3, kind: input, shape index: {}]
  %s4 = inlined_call_operand.hbm [shape: f32[64,128], index: 4, kind: input, shape index: {}]
  %s5 = inlined_call_operand.vmem [shape: f32[1,128], index: 5, kind: input, shape index: {}]
  %s6 = inlined_call_operand.hbm [shape: f32[32,128], index: 6, kind: input, shape index: {}]
  %s7 = inlined_call_operand.vmem [shape: f32[1,128], index: 7, kind: input, shape index: {}]
  %s8 = inlined_call_operand.hbm [shape: f32[8,128], index: 8, kind: output, shape index: {0}]
  %s9 = inlined_call_operand.hbm [shape: f32[8,32], index: 9, kind: output, shape index: {1}, may-alias: {1,9}]
  %10 = xla_tuple %s8, %s9
  %s11 = sld [smem:[#allocation0]]
  $region66: #{tpu_custom_call.1} parent=0
    _
  %s13 = ssub.s32 1, %s11
  %s14 = scalar_select 0, %s13, %s11
  $region1: #{tpu_custom_call.1} parent=0
    #allocation2 [shape = 'u8[4096]{0}', space=vmem, size = 0x1000, scoped, tag = 'input window, operand 0, single buffered']
    #allocation3 [shape = 's32[1]{0}', space=sflag, size = 0x4, scoped, tag = 'scoped memory for tpu_custom_call.1']
    #allocation4 [shape = 's32[1]{0}', space=sflag, size = 0x4, scoped, tag = 'scoped memory for tpu_custom_call.1']
    #allocation5 [shape = 'u8[4096]{0}', space=vmem, size = 0x1000, scoped, tag = 'input window, operand 1, single buffered']
    #allocation6 [shape = 's32[1]{0}', space=sflag, size = 0x4, scoped, tag = 'scoped memory for tpu_custom_call.1']
    #allocation7 [shape = 'u8[32768]{0}', space=vmem, size = 0x8000, scoped, tag = 'input window, operand 4, single buffered']
    #allocation8 [shape = 'u8[16384]{0}', space=vmem, size = 0x4000, scoped, tag = 'input window, operand 6, single buffered']
    #allocation9 [shape = 's32[1]{0}', space=sflag, size = 0x4, scoped, tag = 'scoped memory for tpu_custom_call.1']
    #allocation10 [shape = 'u8[4096]{0}', space=vmem, size = 0x1000, scoped, tag = 'output window, operand 0, single buffered']
    #allocation11 [shape = 'u8[4096]{0}', space=vmem, size = 0x1000, scoped, tag = 'output window, operand 1, single buffered']
    #allocation12 [shape = 's32[1]{0}', space=sflag, size = 0x4, scoped, tag = 'scoped memory for tpu_custom_call.1']
    %15 = vsyncpa [#allocation3], 0
    %16 = vsyncpa [#allocation6], 0
    %17 = vsyncpa [#allocation9], 0
    %18 = vsyncpa [#allocation4], 0
    %19 = vsyncpa [#allocation12], 0
    // Predicated region
    $region2: #{tpu_custom_call.1} parent=1 // pred_check
      _
    $region3: #{tpu_custom_call.1} parent=1 // pred_check_branch
      %21 = sbr.rel (0) target = $region5
    $region4: #{tpu_custom_call.1} parent=1 // pred_region
      %23 = vsyncadd [#allocation3], 0
      %s25 = sshll.u32 %s0, 4
      %s26 = int_to_ptr.hbm [resolvable:$true] %s25
      %s27 = sshll.u32 [#allocation2], 4
      %s28 = int_to_ptr.vmem [resolvable:$true] %s27
      %30 = dma.hbm_to_vmem [thread:$0]  %s26, 128, %s28, [#allocation3]
    $region5: #{tpu_custom_call.1} parent=1 // pred_fallthru
      _
    // Predicated region
    $region6: #{tpu_custom_call.1} parent=1 // pred_check
      _
    $region7: #{tpu_custom_call.1} parent=1 // pred_check_branch
      %32 = sbr.rel (0) target = $region9
    $region8: #{tpu_custom_call.1} parent=1 // pred_region
      %34 = vsyncadd [#allocation6], 0
      %s36 = sshll.u32 %s1, 4
      %s37 = int_to_ptr.hbm [resolvable:$true] %s36
      %s38 = sshll.u32 [#allocation5], 4
      %s39 = int_to_ptr.vmem [resolvable:$true] %s38
      %41 = dma.hbm_to_vmem [thread:$0]  %s37, 128, %s39, [#allocation6]
    $region9: #{tpu_custom_call.1} parent=1 // pred_fallthru
      _
    // Predicated region
    $region10: #{tpu_custom_call.1} parent=1 // pred_check
      _
    $region11: #{tpu_custom_call.1} parent=1 // pred_check_branch
      %43 = sbr.rel (0) target = $region13
    $region12: #{tpu_custom_call.1} parent=1 // pred_region
      _
    $region13: #{tpu_custom_call.1} parent=1 // pred_fallthru
      _
    // Predicated region
    $region14: #{tpu_custom_call.1} parent=1 // pred_check
      _
    $region15: #{tpu_custom_call.1} parent=1 // pred_check_branch
      %45 = sbr.rel (0) target = $region17
    $region16: #{tpu_custom_call.1} parent=1 // pred_region
      _
    $region17: #{tpu_custom_call.1} parent=1 // pred_fallthru
      _
    // Predicated region
    $region18: #{tpu_custom_call.1} parent=1 // pred_check
      _
    $region19: #{tpu_custom_call.1} parent=1 // pred_check_branch
      %47 = sbr.rel (0) target = $region21
    $region20: #{tpu_custom_call.1} parent=1 // pred_region
      %49 = vsyncadd [#allocation6], 0
      %s50 = sshll.u32 %s4, 4
      %s51 = int_to_ptr.hbm [resolvable:$true] %s50
      %s52 = sshll.u32 [#allocation7], 4
      %s53 = int_to_ptr.vmem [resolvable:$true] %s52
      %58 = dma.hbm_to_vmem [thread:$0]  %s51, 1024, %s53, [#allocation6], 128, 128, 8
    $region21: #{tpu_custom_call.1} parent=1 // pred_fallthru
      _
    // Predicated region
    $region22: #{tpu_custom_call.1} parent=1 // pred_check
      _
    $region23: #{tpu_custom_call.1} parent=1 // pred_check_branch
      %60 = sbr.rel (0) target = $region25
    $region24: #{tpu_custom_call.1} parent=1 // pred_region
      _
    $region25: #{tpu_custom_call.1} parent=1 // pred_fallthru
      _
    // Predicated region
    $region26: #{tpu_custom_call.1} parent=1 // pred_check
      _
    $region27: #{tpu_custom_call.1} parent=1 // pred_check_branch
      %62 = sbr.rel (0) target = $region29
    $region28: #{tpu_custom_call.1} parent=1 // pred_region
      %64 = vsyncadd [#allocation9], 0
      %s65 = sshll.u32 %s6, 4
      %s66 = int_to_ptr.hbm [resolvable:$true] %s65
      %s67 = sshll.u32 [#allocation8], 4
      %s68 = int_to_ptr.vmem [resolvable:$true] %s67
      %73 = dma.hbm_to_vmem [thread:$0]  %s66, 512, %s68, [#allocation9], 128, 128, 8
    $region29: #{tpu_custom_call.1} parent=1 // pred_fallthru
      _
    // Predicated region
    $region30: #{tpu_custom_call.1} parent=1 // pred_check
      _
    $region31: #{tpu_custom_call.1} parent=1 // pred_check_branch
      %75 = sbr.rel (0) target = $region33
    $region32: #{tpu_custom_call.1} parent=1 // pred_region
      _
    $region33: #{tpu_custom_call.1} parent=1 // pred_fallthru
      _
    // Predicated region
    $region34: #{tpu_custom_call.1} parent=1 // pred_check
      _
    $region35: #{tpu_custom_call.1} parent=1 // pred_check_branch
      %77 = sbr.rel (0) target = $region37
    $region36: #{tpu_custom_call.1} parent=1 // pred_region
      %79 = dma.done [#allocation3], 128
    $region37: #{tpu_custom_call.1} parent=1 // pred_fallthru
      _
    // Predicated region
    $region38: #{tpu_custom_call.1} parent=1 // pred_check
      _
    $region39: #{tpu_custom_call.1} parent=1 // pred_check_branch
      %81 = sbr.rel (0) target = $region41
    $region40: #{tpu_custom_call.1} parent=1 // pred_region
      %83 = dma.done [#allocation6], 128
    $region41: #{tpu_custom_call.1} parent=1 // pred_fallthru
      _
    // Predicated region
    $region42: #{tpu_custom_call.1} parent=1 // pred_check
      _
    $region43: #{tpu_custom_call.1} parent=1 // pred_check_branch
      %85 = sbr.rel (0) target = $region45
    $region44: #{tpu_custom_call.1} parent=1 // pred_region
      %87 = dma.done [#allocation6], 1024
    $region45: #{tpu_custom_call.1} parent=1 // pred_fallthru
      _
    // Predicated region
    $region46: #{tpu_custom_call.1} parent=1 // pred_check
      _
    $region47: #{tpu_custom_call.1} parent=1 // pred_check_branch
      %89 = sbr.rel (0) target = $region49
    $region48: #{tpu_custom_call.1} parent=1 // pred_region
      %91 = dma.done [#allocation9], 512
    $region49: #{tpu_custom_call.1} parent=1 // pred_fallthru
      _
    %v92 = vld [vmem:[#allocation2] sm:$0xff]
    %v93 = vld [vmem:[#allocation5] sm:$0xff]
    %v94 = vld [vmem:[%s2] sm:$0xff]
    %v95 = vld [vmem:[%s2 + $0x8] sm:$0xff]
    %v96 = vld [vmem:[%s3] sm:$0x1]
    %v98 = vperm.slane %v96, 0
    %vm100 = vcmask 130048
    %v102 = vsel %vm100, %v92, 0
    %104 = vmatpush.msra.mxu0 0.0
    %105 = vmatpush.msra.mxu0 0.0
    %106 = vmatpush.msra.mxu0 0.0
    %107 = vmatpush.msra.mxu0 0.0
    %108 = vmatpush.msra.mxu0 0.0
    %109 = vmatpush.msra.mxu0 0.0
    %110 = vmatpush.msra.mxu0 0.0
    %111 = vmatpush.msra.mxu0 0.0
    %112 = vmatpush.msra.mxu0 0.0
    %113 = vmatpush.msra.mxu0 0.0
    %114 = vmatpush.msra.mxu0 0.0
    %115 = vmatpush.msra.mxu0 0.0
    %116 = vmatpush.msra.mxu0 0.0
    %117 = vmatpush.msra.mxu0 0.0
    %118 = vmatpush.msra.mxu0 %v95
    %119 = vmatpush.msra.mxu0 %v94
    %120 = vmatmul.f32.gmra.mxu0 %v102
    %v121 = vpop.f32.mrf.mxu0
    %v122 = vadd.f32 %v98, %v121
    %123 = vdwg.mxu0
    %v124 = vmax.f32 %v122, 0.0
    %126 = vrot.lane.b32.xlu0 %v93, 32
    %v127 = vpop.permute.xlu0 %126
    %vm129 = vcmask 261120
    %v130 = vsel %vm129, %v124, %v127
    %v131 = vld [vmem:[#allocation7] sm:$0xff]
    %v132 = vld [vmem:[#allocation7 + $0x8] sm:$0xff]
    %v133 = vld [vmem:[#allocation7 + $0x10] sm:$0xff]
    %v134 = vld [vmem:[#allocation7 + $0x18] sm:$0xff]
    %v135 = vld [vmem:[#allocation7 + $0x20] sm:$0xff]
    %v136 = vld [vmem:[#allocation7 + $0x28] sm:$0xff]
    %v137 = vld [vmem:[#allocation7 + $0x30] sm:$0xff]
    %v138 = vld [vmem:[#allocation7 + $0x38] sm:$0xff]
    %v139 = vld [vmem:[%s5] sm:$0x1]
    %v141 = vperm.slane %v139, 0
    %vm143 = vcmask 523264
    %v145 = vsel %vm143, %v130, 0
    %147 = vmatpush.msra.mxu0 0.0
    %148 = vmatpush.msra.mxu0 0.0
    %149 = vmatpush.msra.mxu0 0.0
    %150 = vmatpush.msra.mxu0 0.0
    %151 = vmatpush.msra.mxu0 0.0
    %152 = vmatpush.msra.mxu0 0.0
    %153 = vmatpush.msra.mxu0 0.0
    %154 = vmatpush.msra.mxu0 0.0
    %155 = vmatpush.msra.mxu0 %v138
    %156 = vmatpush.msra.mxu0 %v137
    %157 = vmatpush.msra.mxu0 %v136
    %158 = vmatpush.msra.mxu0 %v135
    %159 = vmatpush.msra.mxu0 %v134
    %160 = vmatpush.msra.mxu0 %v133
    %161 = vmatpush.msra.mxu0 %v132
    %162 = vmatpush.msra.mxu0 %v131
    %163 = vmatmul.f32.gmra.mxu0 %v145
    %v164 = vpop.f32.mrf.mxu0
    %v165 = vadd.f32 %v141, %v164
    %166 = vdwg.mxu0
    %v167 = vxor.u32 %v165, 2147483648
    %v168 = vmul.f32 %v167, 1.442695
    %v169 = vpow.pop %v168
    %v170 = vadd.f32 %v169, 1.0
    %v171 = vrcp.pop %v170
    %v172 = vmul.f32 %v170, %v171
    %v173 = vsub.f32 1.0, %v172
    %v174 = vmul.f32 %v171, %v173
    %v175 = vadd.f32 %v171, %v174
    %vm176 = vweird.f32 %v170
    %vm177 = vweird.f32 %v171
    %vm178 = vmor %vm176, %vm177
    %v179 = vsel %vm178, %v171, %v175
    %v180 = vand.u32 2147483647, %v170
    %vm181 = vcmp.eq.f32.partialorder %v180, 8.507059e+37
    %v182 = vand.u32 %v170, 2147483648
    %v183 = vor.u32 1.1754944e-38, %v182
    %v184 = vsel %vm181, %v183, %v179
    %v185 = vmul.f32 1.0, %v184
    %187 = vrot.lane.b32.xlu0 %v165, 32
    %v188 = vpop.permute.xlu0 %187
    %v190 = vmul.f32 %v185, %v188
    %192 = vrot.lane.b32.xlu0 %v190, 64
    %v193 = vpop.permute.xlu0 %192
    %v195 = vadd.f32 %v165, %v193
    %v196 = vtanh.pop %v195
    %v197 = vsub.f32 1.0, %v185
    %199 = vrot.lane.b32.xlu0 %v196, 96
    %v200 = vpop.permute.xlu0 %199
    %v202 = vmul.f32 %v197, %v200
    %v203 = vmul.f32 %v185, %v127
    %v204 = vadd.f32 %v202, %v203
    %v205 = vld [vmem:[#allocation8] sm:$0xff]
    %v206 = vld [vmem:[#allocation8 + $0x8] sm:$0xff]
    %v207 = vld [vmem:[#allocation8 + $0x10] sm:$0xff]
    %v208 = vld [vmem:[#allocation8 + $0x18] sm:$0xff]
    %v209 = vld [vmem:[%s7] sm:$0x1]
    %v211 = vperm.slane %v209, 0
    %214 = vrot.lane.b32.xlu0 %v204, 96
    %v215 = vpop.permute.xlu0 %214
    %v216 = vsel %vm129, %v215, 0
    %218 = vmatpush.msra.mxu0 0.0
    %219 = vmatpush.msra.mxu0 0.0
    %220 = vmatpush.msra.mxu0 0.0
    %221 = vmatpush.msra.mxu0 0.0
    %222 = vmatpush.msra.mxu0 0.0
    %223 = vmatpush.msra.mxu0 0.0
    %224 = vmatpush.msra.mxu0 0.0
    %225 = vmatpush.msra.mxu0 0.0
    %226 = vmatpush.msra.mxu0 0.0
    %227 = vmatpush.msra.mxu0 0.0
    %228 = vmatpush.msra.mxu0 0.0
    %229 = vmatpush.msra.mxu0 0.0
    %230 = vmatpush.msra.mxu0 %v208
    %231 = vmatpush.msra.mxu0 %v207
    %232 = vmatpush.msra.mxu0 %v206
    %233 = vmatpush.msra.mxu0 %v205
    %234 = vmatmul.f32.gmra.mxu0 %v216
    %v235 = vpop.f32.mrf.mxu0
    %v236 = vadd.f32 %v211, %v235
    %237 = vdwg.mxu0
    %238 = vst [vmem:[#allocation10] sm:$0xff] %v236
    %240 = vst.msk [vmem:[#allocation11] sm:$0xff] %vm129, %v215
    // Predicated region
    $region50: #{tpu_custom_call.1} parent=1 // pred_check
      _
    $region51: #{tpu_custom_call.1} parent=1 // pred_check_branch
      %242 = sbr.rel (0) target = $region53
    $region52: #{tpu_custom_call.1} parent=1 // pred_region
      %244 = vsyncadd [#allocation4], 0
      %s246 = sshll.u32 [#allocation10], 4
      %s247 = int_to_ptr.vmem [resolvable:$true] %s246
      %s248 = sshll.u32 %s8, 4
      %s249 = int_to_ptr.hbm [resolvable:$true] %s248
      %251 = dma.vmem_to_hbm [thread:$0]  %s247, 128, %s249, [#allocation4]
    $region53: #{tpu_custom_call.1} parent=1 // pred_fallthru
      _
    // Predicated region
    $region54: #{tpu_custom_call.1} parent=1 // pred_check
      _
    $region55: #{tpu_custom_call.1} parent=1 // pred_check_branch
      %253 = sbr.rel (0) target = $region57
    $region56: #{tpu_custom_call.1} parent=1 // pred_region
      %255 = vsyncadd [#allocation12], 0
      %s257 = sshll.u32 [#allocation11], 4
      %s258 = int_to_ptr.vmem [resolvable:$true] %s257
      %s259 = sshll.u32 %s9, 4
      %s260 = int_to_ptr.hbm [resolvable:$true] %s259
      %262 = dma.vmem_to_hbm [thread:$0]  %s258, 128, %s260, [#allocation12]
    $region57: #{tpu_custom_call.1} parent=1 // pred_fallthru
      _
    // Predicated region
    $region58: #{tpu_custom_call.1} parent=1 // pred_check
      _
    $region59: #{tpu_custom_call.1} parent=1 // pred_check_branch
      %264 = sbr.rel (0) target = $region61
    $region60: #{tpu_custom_call.1} parent=1 // pred_region
      %266 = dma.done [#allocation4], 128
    $region61: #{tpu_custom_call.1} parent=1 // pred_fallthru
      _
    // Predicated region
    $region62: #{tpu_custom_call.1} parent=1 // pred_check
      _
    $region63: #{tpu_custom_call.1} parent=1 // pred_check_branch
      %268 = sbr.rel (0) target = $region65
    $region64: #{tpu_custom_call.1} parent=1 // pred_region
      %270 = dma.done [#allocation12], 128
    $region65: #{tpu_custom_call.1} parent=1 // pred_fallthru
      _
    %271 = vsyncpa [#allocation3], 1
    %272 = vsyncpa [#allocation6], 1
    %273 = vsyncpa [#allocation9], 1
    %274 = vsyncpa [#allocation4], 1
    %275 = vsyncpa [#allocation12], 1

</llo_original>
